<compile_context>
chip_gen: v5e
topology: v5e:2x2
jax: 0.10.0
libtpu: 0.0.40
codegen_flags: <defaults>
</compile_context>

<pallas_src>
import functools

import numpy as np

import jax
import jax.numpy as jnp
from jax.experimental import pallas as pl
from jax.experimental.pallas import tpu as pltpu

# ----------------------------- model dims (small) -----------------------------
X_DIM, W_DIM, H_DIM, Z_DIM, BATCH = 64, 32, 64, 16, 8
_F32 = jnp.float32
_BF16 = jnp.bfloat16

XW = X_DIM + W_DIM        # 96   (joint encoder input width)
ENC_N = 3 * H_DIM         # 192  (fused encoder hidden width: xw | x | w)
DEC_N = 2 * H_DIM         # 128  (fused decoder hidden width: image | text)
HEAD_N = 128              # head matmul output width (cols 0:96 meaningful)

# ---- packed parameter slab layout (PAR_ROWS x 192 cols, bf16) ----
R_ENC1 = 0                       # (96, 192)  fused encoder layer 1
R_ENC2 = R_ENC1 + XW             # (192,192)  fused encoder layer 2 (block-diag)
R_HEAD = R_ENC2 + ENC_N          # (192,192)  fused mu/logvar heads (block-diag)
R_DEC1 = R_HEAD + ENC_N          # (16, 128)  fused decoder layer 1
R_DEC2 = R_DEC1 + Z_DIM          # (128,128)  fused decoder layer 2 (block-diag)
R_DEC3 = R_DEC2 + DEC_N          # (128,128)  fused decoder layer 3 (block-diag)
R_BIAS = R_DEC3 + DEC_N          # 6 bias rows, each replicated 8x (48 rows)
N_BIAS = 6
PAR_ROWS = R_BIAS + 8 * N_BIAS   # 800 rows
PAR_COLS = ENC_N                 # 192 cols

# ---- output slab layout (cols) ----
# [ mu | logvar | mu_x | logvar_x | mu_w | logvar_w | z | xh | wh | (uninit pad) ]
O_HEADS = 0                     # 6 * Z_DIM = 96 cols straight from the head matmul
O_Z = 6 * Z_DIM                 # 96
O_XH = O_Z + Z_DIM              # 112
O_WH = O_XH + X_DIM             # 176
O_END = O_WH + W_DIM            # 208 (cols 208:256 are never written nor read)
OUT_COLS = 256


# ---------------------------------- kernel ------------------------------------
def jmvae_kernel(mode, *refs):
    if mode:
        x_ref, w_ref, ez_ref, par_ref, out_ref = refs
    else:
        x_ref, w_ref, par_ref, out_ref = refs
        ez_ref = None

    B = x_ref.shape[0]                                # static (tile rows)

    def dot(a, wslice):
        # bf16 x bf16 on the MXU, f32 accumulation.
        return jnp.dot(a.astype(_BF16), wslice, preferred_element_type=jnp.float32)

    def bias(k, n):
        # Bias rows are pre-replicated 8x in the slab -> plain VPU add when the
        # tile has 8 rows; otherwise fall back to a (1,n) broadcast add.
        b8 = par_ref[R_BIAS + 8 * k:R_BIAS + 8 * (k + 1), 0:n]
        return b8 if B == 8 else b8[0:1, :]

    def relu(v):
        return jnp.maximum(v, 0.0)

    x = x_ref[...]                                    # (B, 64)
    w = w_ref[...]                                    # (B, 32)

    # ---- fused encoders: xw_to_z | x_to_zx | w_to_zw in one pass ----
    # Split-K over the (x|w) concat: no host-side concatenate needed.
    h1 = (dot(x, par_ref[R_ENC1:R_ENC1 + X_DIM, :]) +
          dot(w, par_ref[R_ENC1 + X_DIM:R_ENC2, :]))                    # (B,192)
    h1 = relu(h1 + bias(0, ENC_N))
    h2 = relu(dot(h1, par_ref[R_ENC2:R_HEAD, :]) + bias(1, ENC_N))      # (B,192)
    # Head matmul kept to one 128-wide MXU pass (cols 96:128 of weights are 0).
    heads = dot(h2, par_ref[R_HEAD:R_DEC1, 0:HEAD_N]) + bias(2, HEAD_N)  # (B,128)
    # heads cols 0:96 = mu | logvar | mu_x | logvar_x | mu_w | logvar_w

    mu = heads[:, 0:Z_DIM]
    logvar = heads[:, Z_DIM:2 * Z_DIM]
    if mode:                                          # static python bool
        z = ez_ref[...] * jnp.exp(0.5 * logvar) + mu  # torch.rand_like -> uniform
    else:
        z = mu
    # NOTE: zx / zw reparameterizations in the reference are dead values
    # (never returned or consumed), so they are intentionally not computed.

    # ---- fused decoders: z_to_x | z_to_w side by side ----
    hd1 = relu(dot(z, par_ref[R_DEC1:R_DEC2, 0:DEC_N]) + bias(3, DEC_N))     # (B,128)
    hd2 = relu(dot(hd1, par_ref[R_DEC2:R_DEC3, 0:DEC_N]) + bias(4, DEC_N))   # (B,128)
    logits = dot(hd2, par_ref[R_DEC3:R_BIAS, 0:DEC_N]) + bias(5, DEC_N)      # (B,128)

    xh_logits = logits[:, 0:X_DIM]
    wh_logits = logits[:, X_DIM:X_DIM + W_DIM]

    # sigmoid via EUP exp + approximate reciprocal (keeps the divide off the VALU)
    xh = pl.reciprocal(1.0 + jnp.exp(-xh_logits), approx=True)
    # log-softmax over the text vocabulary
    m = jnp.max(wh_logits, axis=-1, keepdims=True)
    s = wh_logits - m
    wh = s - jnp.log(jnp.sum(jnp.exp(s), axis=-1, keepdims=True))

    # ---- single lane-dense output slab (cols 208:256 intentionally unwritten) ----
    out_ref[:, O_HEADS:O_Z] = heads[:, 0:O_Z]
    out_ref[:, O_Z:O_XH] = z
    out_ref[:, O_XH:O_WH] = xh
    out_ref[:, O_WH:O_END] = wh


# --------------------------------- wrapper -------------------------------------
@functools.partial(jax.jit, static_argnames=("mode", "block_b"))
def jmvae_forward(x, w, e_z, param_slab, *, mode, block_b=None):
    """Full JMVAE forward as one pallas_call.

    Returns the packed (B, 256) output slab; slice with `unpack_outputs` (done
    lazily outside the jit so the hot path has a single output).  `e_z` may be
    None when mode=False (no noise is shipped on the deterministic path).
    """
    B = x.shape[0]
    kernel = functools.partial(jmvae_kernel, bool(mode))
    operands = (x, w) + ((e_z,) if mode else ()) + (param_slab,)
    out_shape = jax.ShapeDtypeStruct((B, OUT_COLS), _F32)

    if block_b is None or block_b >= B:
        # Single un-gridded call: everything resident in VMEM.
        vmem = pl.BlockSpec(memory_space=pltpu.MemorySpace.VMEM)
        return pl.pallas_call(
            kernel,
            out_shape=out_shape,
            in_specs=[vmem] * len(operands),
            out_specs=vmem,
        )(*operands)

    # Batch-tiled path (useful on v7x: "parallel" grid axis shards across TCs).
    assert B % block_b == 0 and block_b % 8 == 0, (B, block_b)
    act_dims = [X_DIM, W_DIM] + ([Z_DIM] if mode else [])
    in_specs = [pl.BlockSpec((block_b, d), lambda i: (i, 0)) for d in act_dims]
    in_specs.append(pl.BlockSpec((PAR_ROWS, PAR_COLS), lambda i: (0, 0)))
    out_spec = pl.BlockSpec((block_b, OUT_COLS), lambda i: (i, 0))
    return pl.pallas_call(
        kernel,
        out_shape=out_shape,
        grid=(B // block_b,),
        in_specs=in_specs,
        out_specs=out_spec,
        compiler_params=pltpu.CompilerParams(dimension_semantics=("parallel",)),
    )(*operands)


def unpack_outputs(out):
    """Host-side (lazy) slicing of the packed output slab -> 9 model outputs."""
    Z = Z_DIM
    mu = out[:, 0:Z]
    logvar = out[:, Z:2 * Z]
    mu_x = out[:, 2 * Z:3 * Z]
    logvar_x = out[:, 3 * Z:4 * Z]
    mu_w = out[:, 4 * Z:5 * Z]
    logvar_w = out[:, 5 * Z:6 * Z]
    z = out[:, O_Z:O_Z + Z]
    xh = out[:, O_XH:O_XH + X_DIM]
    wh = out[:, O_WH:O_WH + W_DIM]
    return mu, logvar, z, xh, wh, mu_x, logvar_x, mu_w, logvar_w


# ----------------------------- deterministic init ------------------------------
def _init_linear(key, fan_in, fan_out):
    """Mirrors torch.nn.Linear default init (uniform +-1/sqrt(fan_in))."""
    kw, kb = jax.random.split(key)
    bound = 1.0 / (fan_in ** 0.5)
    W = jax.random.uniform(kw, (fan_in, fan_out), _F32, -bound, bound)
    b = jax.random.uniform(kb, (fan_out,), _F32, -bound, bound)
    return W, b


def _init_encoder(key, in_dim, h_dim, z_dim):
    k1, k2, k3, k4 = jax.random.split(key, 4)
    W1, b1 = _init_linear(k1, in_dim, h_dim)
    W2, b2 = _init_linear(k2, h_dim, h_dim)
    Wmu, bmu = _init_linear(k3, h_dim, z_dim)
    Wlv, blv = _init_linear(k4, h_dim, z_dim)
    return dict(W1=W1, b1=b1, W2=W2, b2=b2, Wmu=Wmu, bmu=bmu, Wlv=Wlv, blv=blv)


def _init_decoder(key, z_dim, h_dim, out_dim):
    k1, k2, k3 = jax.random.split(key, 3)
    W1, b1 = _init_linear(k1, z_dim, h_dim)
    W2, b2 = _init_linear(k2, h_dim, h_dim)
    W3, b3 = _init_linear(k3, h_dim, out_dim)
    return dict(W1=W1, b1=b1, W2=W2, b2=b2, W3=W3, b3=b3)


def init_params(key):
    k_xw, k_x, k_w, k_dx, k_dw = jax.random.split(key, 5)
    return {
        "xw": _init_encoder(k_xw, XW, H_DIM, Z_DIM),      # xw_to_z
        "x": _init_encoder(k_x, X_DIM, H_DIM, Z_DIM),     # x_to_zx
        "w": _init_encoder(k_w, W_DIM, H_DIM, Z_DIM),     # w_to_zw
        "dx": _init_decoder(k_dx, Z_DIM, H_DIM, X_DIM),   # z_to_x
        "dw": _init_decoder(k_dw, Z_DIM, H_DIM, W_DIM),   # z_to_w
    }


# --------------------------- host-side parameter packing ------------------------
def pack_params(p):
    """Packs all 36 parameter arrays into one contiguous (800, 192) bf16 slab."""
    H, Z, X = H_DIM, Z_DIM, X_DIM
    Wp = np.zeros((PAR_ROWS, PAR_COLS), np.float32)

    def put_bias(k, col, vec):
        v = np.asarray(vec, np.float32)
        # pre-replicated 8x -> plain VPU add in the kernel (no sublane broadcast)
        Wp[R_BIAS + 8 * k:R_BIAS + 8 * (k + 1), col:col + v.shape[0]] = v[None, :]

    # fused encoder layer 1: input [x|w] -> [h_xw | h_x | h_w]
    Wp[R_ENC1:R_ENC1 + XW, 0:H] = np.asarray(p["xw"]["W1"])
    Wp[R_ENC1:R_ENC1 + X, H:2 * H] = np.asarray(p["x"]["W1"])
    Wp[R_ENC1 + X:R_ENC1 + XW, 2 * H:3 * H] = np.asarray(p["w"]["W1"])
    put_bias(0, 0, p["xw"]["b1"]); put_bias(0, H, p["x"]["b1"]); put_bias(0, 2 * H, p["w"]["b1"])

    # fused encoder layer 2: block-diagonal
    Wp[R_ENC2:R_ENC2 + H, 0:H] = np.asarray(p["xw"]["W2"])
    Wp[R_ENC2 + H:R_ENC2 + 2 * H, H:2 * H] = np.asarray(p["x"]["W2"])
    Wp[R_ENC2 + 2 * H:R_ENC2 + 3 * H, 2 * H:3 * H] = np.asarray(p["w"]["W2"])
    put_bias(1, 0, p["xw"]["b2"]); put_bias(1, H, p["x"]["b2"]); put_bias(1, 2 * H, p["w"]["b2"])

    # fused mu/logvar heads: block-diagonal over encoders, mu||logvar per block.
    # Only cols 0:96 carry data; cols 96:192 stay zero (kernel reads cols 0:128).
    Wp[R_HEAD:R_HEAD + H, 0:Z] = np.asarray(p["xw"]["Wmu"])
    Wp[R_HEAD:R_HEAD + H, Z:2 * Z] = np.asarray(p["xw"]["Wlv"])
    Wp[R_HEAD + H:R_HEAD + 2 * H, 2 * Z:3 * Z] = np.asarray(p["x"]["Wmu"])
    Wp[R_HEAD + H:R_HEAD + 2 * H, 3 * Z:4 * Z] = np.asarray(p["x"]["Wlv"])
    Wp[R_HEAD + 2 * H:R_HEAD + 3 * H, 4 * Z:5 * Z] = np.asarray(p["w"]["Wmu"])
    Wp[R_HEAD + 2 * H:R_HEAD + 3 * H, 5 * Z:6 * Z] = np.asarray(p["w"]["Wlv"])
    put_bias(2, 0, p["xw"]["bmu"]); put_bias(2, Z, p["xw"]["blv"])
    put_bias(2, 2 * Z, p["x"]["bmu"]); put_bias(2, 3 * Z, p["x"]["blv"])
    put_bias(2, 4 * Z, p["w"]["bmu"]); put_bias(2, 5 * Z, p["w"]["blv"])

    # fused decoder layer 1: z -> [h_dec_x | h_dec_w]
    Wp[R_DEC1:R_DEC1 + Z, 0:H] = np.asarray(p["dx"]["W1"])
    Wp[R_DEC1:R_DEC1 + Z, H:2 * H] = np.asarray(p["dw"]["W1"])
    put_bias(3, 0, p["dx"]["b1"]); put_bias(3, H, p["dw"]["b1"])

    # fused decoder layer 2: block-diagonal
    Wp[R_DEC2:R_DEC2 + H, 0:H] = np.asarray(p["dx"]["W2"])
    Wp[R_DEC2 + H:R_DEC2 + 2 * H, H:2 * H] = np.asarray(p["dw"]["W2"])
    put_bias(4, 0, p["dx"]["b2"]); put_bias(4, H, p["dw"]["b2"])

    # fused decoder layer 3: block-diagonal -> [xh logits | wh logits]
    Wp[R_DEC3:R_DEC3 + H, 0:X] = np.asarray(p["dx"]["W3"])
    Wp[R_DEC3 + H:R_DEC3 + 2 * H, X:X + W_DIM] = np.asarray(p["dw"]["W3"])
    put_bias(5, 0, p["dx"]["b3"]); put_bias(5, X, p["dw"]["b3"])

    # bf16 halves the dominant weight DMA; MXU natively consumes bf16.
    return jnp.asarray(Wp).astype(_BF16)


# ------------------------------ pure-JAX reference ------------------------------
def reference_forward(x, w, e_z, p, mode):
    def enc(h, q):
        h1 = jax.nn.relu(h @ q["W1"] + q["b1"])
        h2 = jax.nn.relu(h1 @ q["W2"] + q["b2"])
        return h2 @ q["Wmu"] + q["bmu"], h2 @ q["Wlv"] + q["blv"]

    def dec(z, q):
        h1 = jax.nn.relu(z @ q["W1"] + q["b1"])
        h2 = jax.nn.relu(h1 @ q["W2"] + q["b2"])
        return h2 @ q["W3"] + q["b3"]

    xw = jnp.concatenate([x, w], axis=1)
    mu, logvar = enc(xw, p["xw"])
    z = e_z * jnp.exp(0.5 * logvar) + mu if mode else mu
    mu_x, logvar_x = enc(x, p["x"])
    mu_w, logvar_w = enc(w, p["w"])
    xh = jax.nn.sigmoid(dec(z, p["dx"]))
    wh = jax.nn.log_softmax(dec(z, p["dw"]), axis=-1)
    return mu, logvar, z, xh, wh, mu_x, logvar_x, mu_w, logvar_w


def _check(outs, refs, B):
    expected_shapes = [
        (B, Z_DIM), (B, Z_DIM), (B, Z_DIM),
        (B, X_DIM), (B, W_DIM),
        (B, Z_DIM), (B, Z_DIM), (B, Z_DIM), (B, Z_DIM),
    ]
    for o, r, s in zip(outs, refs, expected_shapes):
        assert o.shape == s, (o.shape, s)
        assert bool(jnp.all(jnp.isfinite(o)))
        err = float(jnp.max(jnp.abs(o - r)))
        assert bool(jnp.allclose(o, r, atol=5e-2, rtol=5e-2)), err


# ----------------------------------- main ---------------------------------------
if __name__ == "__main__":
    root = jax.random.PRNGKey(0)
    k_param, k_x, k_w, k_e = jax.random.split(root, 4)

    params = init_params(k_param)
    param_slab = pack_params(params)

    x = jax.random.normal(k_x, (BATCH, X_DIM), _F32)
    w = jax.random.uniform(k_w, (BATCH, W_DIM), _F32)
    e_z = jax.random.uniform(k_e, (BATCH, Z_DIM), _F32)   # torch.rand_like analogue

    # stochastic + deterministic, single un-gridded call (B=8); no eps shipped
    # on the deterministic path.
    slab_s = jax.block_until_ready(jmvae_forward(x, w, e_z, param_slab, mode=True))
    slab_d = jax.block_until_ready(jmvae_forward(x, w, None, param_slab, mode=False))
    outs_s = unpack_outputs(slab_s)
    outs_d = unpack_outputs(slab_d)

    ref_s = reference_forward(x, w, e_z, params, True)
    ref_d = reference_forward(x, w, e_z, params, False)
    _check(outs_s, ref_s, BATCH)
    _check(outs_d, ref_d, BATCH)
    # deterministic mode: z == mu
    assert bool(jnp.allclose(outs_d[2], outs_d[0]))

    # batch-tiled path (grid over batch, "parallel" semantics -> 2 TCs on v7x)
    B2 = 32
    k2x, k2w, k2e = jax.random.split(jax.random.PRNGKey(1), 3)
    x2 = jax.random.normal(k2x, (B2, X_DIM), _F32)
    w2 = jax.random.uniform(k2w, (B2, W_DIM), _F32)
    e2 = jax.random.uniform(k2e, (B2, Z_DIM), _F32)
    slab2 = jax.block_until_ready(
        jmvae_forward(x2, w2, e2, param_slab, mode=True, block_b=8))
    _check(unpack_outputs(slab2), reference_forward(x2, w2, e2, params, True), B2)

    print("KERNEL_OK")
</pallas_src>

<mosaic_0001>
module attributes {stable_mosaic.version = 11 : i64} {
  func.func @jmvae_kernel(%arg0: memref<8x64xf32, #tpu.memory_space<vmem>>, %arg1: memref<8x32xf32, #tpu.memory_space<vmem>>, %arg2: memref<8x16xf32, #tpu.memory_space<vmem>>, %arg3: memref<800x192xbf16, #tpu.memory_space<vmem>>, %arg4: memref<8x256xf32, #tpu.memory_space<vmem>>) attributes {dimension_semantics = [], scalar_prefetch = 0 : i64, scratch_operands = 0 : i64, tpu.core_type = #tpu.core_type<tc>} {
    %c0 = arith.constant 0 : index
    %c0_0 = arith.constant 0 : index
    %0 = vector.load %arg0[%c0, %c0_0] : memref<8x64xf32, #tpu.memory_space<vmem>>, vector<8x64xf32>
    %c0_1 = arith.constant 0 : index
    %c0_2 = arith.constant 0 : index
    %1 = vector.load %arg1[%c0_1, %c0_2] : memref<8x32xf32, #tpu.memory_space<vmem>>, vector<8x32xf32>
    %c0_3 = arith.constant 0 : index
    %c0_4 = arith.constant 0 : index
    %2 = vector.load %arg3[%c0_3, %c0_4] : memref<800x192xbf16, #tpu.memory_space<vmem>>, vector<64x192xbf16>
    %3 = arith.truncf %0 : vector<8x64xf32> to vector<8x64xbf16>
    %cst = arith.constant dense<0.000000e+00> : vector<8x192xf32>
    %4 = tpu.matmul %3, %2, %cst {dimension_numbers = #tpu.dot_dimension_numbers<[1], [0], [0], [1], [0, 0, 1, 1], [], []>} : vector<8x64xbf16>, vector<64x192xbf16>, vector<8x192xf32> -> vector<8x192xf32>
    %c64 = arith.constant 64 : index
    %c0_5 = arith.constant 0 : index
    %5 = vector.load %arg3[%c64, %c0_5] : memref<800x192xbf16, #tpu.memory_space<vmem>>, vector<32x192xbf16>
    %6 = arith.truncf %1 : vector<8x32xf32> to vector<8x32xbf16>
    %cst_6 = arith.constant dense<0.000000e+00> : vector<8x192xf32>
    %7 = tpu.matmul %6, %5, %cst_6 {dimension_numbers = #tpu.dot_dimension_numbers<[1], [0], [0], [1], [0, 0, 1, 1], [], []>} : vector<8x32xbf16>, vector<32x192xbf16>, vector<8x192xf32> -> vector<8x192xf32>
    %8 = arith.addf %4, %7 : vector<8x192xf32>
    %c752 = arith.constant 752 : index
    %c0_7 = arith.constant 0 : index
    %9 = vector.load %arg3[%c752, %c0_7] : memref<800x192xbf16, #tpu.memory_space<vmem>>, vector<8x192xbf16>
    %10 = arith.extf %9 : vector<8x192xbf16> to vector<8x192xf32>
    %11 = arith.addf %8, %10 : vector<8x192xf32>
    %cst_8 = arith.constant 0.000000e+00 : f32
    %12 = vector.broadcast %cst_8 : f32 to vector<8x192xf32>
    %13 = arith.maximumf %11, %12 : vector<8x192xf32>
    %c96 = arith.constant 96 : index
    %c0_9 = arith.constant 0 : index
    %14 = vector.load %arg3[%c96, %c0_9] : memref<800x192xbf16, #tpu.memory_space<vmem>>, vector<192x192xbf16>
    %15 = arith.truncf %13 : vector<8x192xf32> to vector<8x192xbf16>
    %cst_10 = arith.constant dense<0.000000e+00> : vector<8x192xf32>
    %16 = tpu.matmul %15, %14, %cst_10 {dimension_numbers = #tpu.dot_dimension_numbers<[1], [0], [0], [1], [0, 0, 1, 1], [], []>} : vector<8x192xbf16>, vector<192x192xbf16>, vector<8x192xf32> -> vector<8x192xf32>
    %c760 = arith.constant 760 : index
    %c0_11 = arith.constant 0 : index
    %17 = vector.load %arg3[%c760, %c0_11] : memref<800x192xbf16, #tpu.memory_space<vmem>>, vector<8x192xbf16>
    %18 = arith.extf %17 : vector<8x192xbf16> to vector<8x192xf32>
    %19 = arith.addf %16, %18 : vector<8x192xf32>
    %cst_12 = arith.constant 0.000000e+00 : f32
    %20 = vector.broadcast %cst_12 : f32 to vector<8x192xf32>
    %21 = arith.maximumf %19, %20 : vector<8x192xf32>
    %c288 = arith.constant 288 : index
    %c0_13 = arith.constant 0 : index
    %22 = vector.load %arg3[%c288, %c0_13] : memref<800x192xbf16, #tpu.memory_space<vmem>>, vector<192x128xbf16>
    %23 = arith.truncf %21 : vector<8x192xf32> to vector<8x192xbf16>
    %cst_14 = arith.constant dense<0.000000e+00> : vector<8x128xf32>
    %24 = tpu.matmul %23, %22, %cst_14 {dimension_numbers = #tpu.dot_dimension_numbers<[1], [0], [0], [1], [0, 0, 1, 1], [], []>} : vector<8x192xbf16>, vector<192x128xbf16>, vector<8x128xf32> -> vector<8x128xf32>
    %c768 = arith.constant 768 : index
    %c0_15 = arith.constant 0 : index
    %25 = vector.load %arg3[%c768, %c0_15] : memref<800x192xbf16, #tpu.memory_space<vmem>>, vector<8x128xbf16>
    %26 = arith.extf %25 : vector<8x128xbf16> to vector<8x128xf32>
    %27 = arith.addf %24, %26 : vector<8x128xf32>
    %28 = vector.extract_strided_slice %27 {offsets = [0, 0], sizes = [8, 16], strides = [1, 1]} : vector<8x128xf32> to vector<8x16xf32>
    %29 = vector.extract_strided_slice %27 {offsets = [0, 16], sizes = [8, 16], strides = [1, 1]} : vector<8x128xf32> to vector<8x16xf32>
    %c0_16 = arith.constant 0 : index
    %c0_17 = arith.constant 0 : index
    %30 = vector.load %arg2[%c0_16, %c0_17] : memref<8x16xf32, #tpu.memory_space<vmem>>, vector<8x16xf32>
    %cst_18 = arith.constant 5.000000e-01 : f32
    %31 = vector.broadcast %cst_18 : f32 to vector<8x16xf32>
    %32 = arith.mulf %31, %29 : vector<8x16xf32>
    %33 = math.exp %32 : vector<8x16xf32>
    %34 = arith.mulf %30, %33 : vector<8x16xf32>
    %35 = arith.addf %34, %28 : vector<8x16xf32>
    %c480 = arith.constant 480 : index
    %c0_19 = arith.constant 0 : index
    %36 = vector.load %arg3[%c480, %c0_19] : memref<800x192xbf16, #tpu.memory_space<vmem>>, vector<16x128xbf16>
    %37 = arith.truncf %35 : vector<8x16xf32> to vector<8x16xbf16>
    %cst_20 = arith.constant dense<0.000000e+00> : vector<8x128xf32>
    %38 = tpu.matmul %37, %36, %cst_20 {dimension_numbers = #tpu.dot_dimension_numbers<[1], [0], [0], [1], [0, 0, 1, 1], [], []>} : vector<8x16xbf16>, vector<16x128xbf16>, vector<8x128xf32> -> vector<8x128xf32>
    %c776 = arith.constant 776 : index
    %c0_21 = arith.constant 0 : index
    %39 = vector.load %arg3[%c776, %c0_21] : memref<800x192xbf16, #tpu.memory_space<vmem>>, vector<8x128xbf16>
    %40 = arith.extf %39 : vector<8x128xbf16> to vector<8x128xf32>
    %41 = arith.addf %38, %40 : vector<8x128xf32>
    %cst_22 = arith.constant 0.000000e+00 : f32
    %42 = vector.broadcast %cst_22 : f32 to vector<8x128xf32>
    %43 = arith.maximumf %41, %42 : vector<8x128xf32>
    %c496 = arith.constant 496 : index
    %c0_23 = arith.constant 0 : index
    %44 = vector.load %arg3[%c496, %c0_23] : memref<800x192xbf16, #tpu.memory_space<vmem>>, vector<128x128xbf16>
    %45 = arith.truncf %43 : vector<8x128xf32> to vector<8x128xbf16>
    %cst_24 = arith.constant dense<0.000000e+00> : vector<8x128xf32>
    %46 = tpu.matmul %45, %44, %cst_24 {dimension_numbers = #tpu.dot_dimension_numbers<[1], [0], [0], [1], [0, 0, 1, 1], [], []>} : vector<8x128xbf16>, vector<128x128xbf16>, vector<8x128xf32> -> vector<8x128xf32>
    %c784 = arith.constant 784 : index
    %c0_25 = arith.constant 0 : index
    %47 = vector.load %arg3[%c784, %c0_25] : memref<800x192xbf16, #tpu.memory_space<vmem>>, vector<8x128xbf16>
    %48 = arith.extf %47 : vector<8x128xbf16> to vector<8x128xf32>
    %49 = arith.addf %46, %48 : vector<8x128xf32>
    %cst_26 = arith.constant 0.000000e+00 : f32
    %50 = vector.broadcast %cst_26 : f32 to vector<8x128xf32>
    %51 = arith.maximumf %49, %50 : vector<8x128xf32>
    %c624 = arith.constant 624 : index
    %c0_27 = arith.constant 0 : index
    %52 = vector.load %arg3[%c624, %c0_27] : memref<800x192xbf16, #tpu.memory_space<vmem>>, vector<128x128xbf16>
    %53 = arith.truncf %51 : vector<8x128xf32> to vector<8x128xbf16>
    %cst_28 = arith.constant dense<0.000000e+00> : vector<8x128xf32>
    %54 = tpu.matmul %53, %52, %cst_28 {dimension_numbers = #tpu.dot_dimension_numbers<[1], [0], [0], [1], [0, 0, 1, 1], [], []>} : vector<8x128xbf16>, vector<128x128xbf16>, vector<8x128xf32> -> vector<8x128xf32>
    %c792 = arith.constant 792 : index
    %c0_29 = arith.constant 0 : index
    %55 = vector.load %arg3[%c792, %c0_29] : memref<800x192xbf16, #tpu.memory_space<vmem>>, vector<8x128xbf16>
    %56 = arith.extf %55 : vector<8x128xbf16> to vector<8x128xf32>
    %57 = arith.addf %54, %56 : vector<8x128xf32>
    %58 = vector.extract_strided_slice %57 {offsets = [0, 0], sizes = [8, 64], strides = [1, 1]} : vector<8x128xf32> to vector<8x64xf32>
    %59 = vector.extract_strided_slice %57 {offsets = [0, 64], sizes = [8, 32], strides = [1, 1]} : vector<8x128xf32> to vector<8x32xf32>
    %cst_30 = arith.constant 0.000000e+00 : f32
    %60 = vector.broadcast %cst_30 : f32 to vector<8x64xf32>
    %61 = arith.subf %60, %58 : vector<8x64xf32>
    %62 = math.exp %61 : vector<8x64xf32>
    %cst_31 = arith.constant 1.000000e+00 : f32
    %63 = vector.broadcast %cst_31 : f32 to vector<8x64xf32>
    %64 = arith.addf %63, %62 : vector<8x64xf32>
    %65 = tpu.reciprocal %64 {approx = true} : vector<8x64xf32> -> vector<8x64xf32>
    %cst_32 = arith.constant dense<0xFF800000> : vector<8xf32>
    %66 = vector.multi_reduction <maximumf>, %59, %cst_32 [1] : vector<8x32xf32> to vector<8xf32>
    %67 = vector.shape_cast %66 : vector<8xf32> to vector<8x1xf32>
    %68 = vector.broadcast %67 : vector<8x1xf32> to vector<8x32xf32>
    %69 = arith.subf %59, %68 : vector<8x32xf32>
    %70 = math.exp %69 : vector<8x32xf32>
    %cst_33 = arith.constant dense<0.000000e+00> : vector<8xf32>
    %71 = vector.multi_reduction <add>, %70, %cst_33 [1] : vector<8x32xf32> to vector<8xf32>
    %72 = vector.shape_cast %71 : vector<8xf32> to vector<8x1xf32>
    %73 = math.log %72 : vector<8x1xf32>
    %74 = vector.broadcast %73 : vector<8x1xf32> to vector<8x32xf32>
    %75 = arith.subf %69, %74 : vector<8x32xf32>
    %76 = vector.extract_strided_slice %27 {offsets = [0, 0], sizes = [8, 96], strides = [1, 1]} : vector<8x128xf32> to vector<8x96xf32>
    %c0_34 = arith.constant 0 : index
    %c0_35 = arith.constant 0 : index
    %77 = vector.load %arg4[%c0_34, %c0_35] : memref<8x256xf32, #tpu.memory_space<vmem>>, vector<8x96xf32>
    tpu.vector_store %arg4[%c0_34, %c0_35], %76 {strides = array<i32>} : memref<8x256xf32, #tpu.memory_space<vmem>>, vector<8x96xf32>,
    %c0_36 = arith.constant 0 : index
    %c96_37 = arith.constant 96 : index
    %78 = vector.load %arg4[%c0_36, %c96_37] : memref<8x256xf32, #tpu.memory_space<vmem>>, vector<8x16xf32>
    tpu.vector_store %arg4[%c0_36, %c96_37], %35 {strides = array<i32>} : memref<8x256xf32, #tpu.memory_space<vmem>>, vector<8x16xf32>,
    %c0_38 = arith.constant 0 : index
    %c112 = arith.constant 112 : index
    %79 = vector.load %arg4[%c0_38, %c112] : memref<8x256xf32, #tpu.memory_space<vmem>>, vector<8x64xf32>
    tpu.vector_store %arg4[%c0_38, %c112], %65 {strides = array<i32>} : memref<8x256xf32, #tpu.memory_space<vmem>>, vector<8x64xf32>,
    %c0_39 = arith.constant 0 : index
    %c176 = arith.constant 176 : index
    %80 = vector.load %arg4[%c0_39, %c176] : memref<8x256xf32, #tpu.memory_space<vmem>>, vector<8x32xf32>
    tpu.vector_store %arg4[%c0_39, %c176], %75 {strides = array<i32>} : memref<8x256xf32, #tpu.memory_space<vmem>>, vector<8x32xf32>,
    return
  }
}

</mosaic_0001>

<llo_original>
// kernel: jmvae_forward.1
$region0: #{jmvae_forward.1}
  #allocation0 [shape = 'u32[]', space=smem, size = 0x4, offset = 0x4, fixed_abs, tag = 'smem constant byte address 0x4 - core index']
  #allocation1 [shape = 'u32[72,128]{1,0:T(1,128)}', space=vmem, size = 0x9000, scoped, tag = 'internal scratch']
  %s0 = inlined_call_operand.vmem [shape: f32[8,64], index: 0, kind: input, shape index: {}]
  %s1 = inlined_call_operand.vmem [shape: f32[8,32], index: 1, kind: input, shape index: {}]
  %s2 = inlined_call_operand.vmem [shape: f32[8,16], index: 2, kind: input, shape index: {}]
  %s3 = inlined_call_operand.vmem [shape: bf16[800,192], index: 3, kind: input, shape index: {}]
  %s4 = inlined_call_operand.hbm [shape: f32[8,256], index: 4, kind: output, shape index: {}]
  %s5 = sld [smem:[#allocation0]]
  $region26: #{jmvae_forward.1} parent=0
    _
  %s7 = ssub.s32 1, %s5
  %s8 = scalar_select 0, %s7, %s5
  $region1: #{jmvae_forward.1} parent=0
    #allocation2 [shape = 'u8[8192]{0}', space=vmem, size = 0x2000, scoped, tag = 'output window, operand 0, single buffered']
    #allocation3 [shape = 's32[1]{0}', space=sflag, size = 0x4, scoped, tag = 'scoped memory for jmvae_forward.1']
    %9 = vsyncpa [#allocation3], 0
    // Predicated region
    $region2: #{jmvae_forward.1} parent=1 // pred_check
      _
    $region3: #{jmvae_forward.1} parent=1 // pred_check_branch
      %11 = sbr.rel (0) target = $region5
    $region4: #{jmvae_forward.1} parent=1 // pred_region
      _
    $region5: #{jmvae_forward.1} parent=1 // pred_fallthru
      _
    // Predicated region
    $region6: #{jmvae_forward.1} parent=1 // pred_check
      _
    $region7: #{jmvae_forward.1} parent=1 // pred_check_branch
      %13 = sbr.rel (0) target = $region9
    $region8: #{jmvae_forward.1} parent=1 // pred_region
      _
    $region9: #{jmvae_forward.1} parent=1 // pred_fallthru
      _
    // Predicated region
    $region10: #{jmvae_forward.1} parent=1 // pred_check
      _
    $region11: #{jmvae_forward.1} parent=1 // pred_check_branch
      %15 = sbr.rel (0) target = $region13
    $region12: #{jmvae_forward.1} parent=1 // pred_region
      _
    $region13: #{jmvae_forward.1} parent=1 // pred_fallthru
      _
    // Predicated region
    $region14: #{jmvae_forward.1} parent=1 // pred_check
      _
    $region15: #{jmvae_forward.1} parent=1 // pred_check_branch
      %17 = sbr.rel (0) target = $region17
    $region16: #{jmvae_forward.1} parent=1 // pred_region
      _
    $region17: #{jmvae_forward.1} parent=1 // pred_fallthru
      _
    %v19 = vld [vmem:[%s0] sm:$0xff]
    %v20 = vld [vmem:[%s1] sm:$0xff]
    %v21 = vld [vmem:[%s3] sm:$0xff]
    %v22 = vld [vmem:[%s3 + $0x8] sm:$0xff]
    %v23 = vld [vmem:[%s3 + $0x10] sm:$0xff]
    %v24 = vld [vmem:[%s3 + $0x18] sm:$0xff]
    %v25 = vld [vmem:[%s3 + $0x20] sm:$0xff]
    %v26 = vld [vmem:[%s3 + $0x28] sm:$0xff]
    %v27 = vld [vmem:[%s3 + $0x30] sm:$0xff]
    %v28 = vld [vmem:[%s3 + $0x38] sm:$0xff]
    %v29 = vpack.c.bf16 %v19, %v19
    %v30 = vld [vmem:[%s3 + $0x40] sm:$0xff]
    %v31 = vld [vmem:[%s3 + $0x48] sm:$0xff]
    %v32 = vld [vmem:[%s3 + $0x50] sm:$0xff]
    %v33 = vld [vmem:[%s3 + $0x58] sm:$0xff]
    %v34 = vpack.c.bf16 %v20, %v20
    %v39 = vunpack.c.l.b16 %v30
    %v40 = vunpack.c.h.b16 %v30
    %v41 = vunpack.c.l.b16 %v31
    %v42 = vunpack.c.h.b16 %v31
    %v43 = vunpack.c.l.b16 %v32
    %v44 = vunpack.c.h.b16 %v32
    %v45 = vunpack.c.l.b16 %v33
    %v46 = vunpack.c.h.b16 %v33
    %v47 = vpack.c.b16 %v41, %v39
    %v48 = vpack.c.b16 %v42, %v40
    %v49 = vpack.c.b16 %v45, %v43
    %v50 = vpack.c.b16 %v46, %v44
    %vm55 = vcmask 261120
    %v57 = vsel %vm55, %v34, 0
    %59 = vmatpush.bf16.msra.mxu0 0
    %60 = vmatpush.bf16.msra.mxu0 0
    %61 = vmatpush.bf16.msra.mxu0 0
    %62 = vmatpush.bf16.msra.mxu0 0
    %63 = vmatpush.bf16.msra.mxu0 0
    %64 = vmatpush.bf16.msra.mxu0 0
    %65 = vmatpush.bf16.msra.mxu0 %v49
    %66 = vmatpush.bf16.msra.mxu0 %v47
    %67 = vmatmul.bf16.gmra.mxu0 %v57
    %v68 = vpop.f32.mrf.mxu0
    %v69 = vadd.f32 0.0, %v68
    %v70 = vpop.f32.mrf.mxu0
    %71 = vdwg.mxu0
    %72 = vmatpush.bf16.msra.mxu0 0
    %73 = vmatpush.bf16.msra.mxu0 0
    %74 = vmatpush.bf16.msra.mxu0 0
    %75 = vmatpush.bf16.msra.mxu0 0
    %76 = vmatpush.bf16.msra.mxu0 0
    %77 = vmatpush.bf16.msra.mxu0 0
    %78 = vmatpush.bf16.msra.mxu0 %v50
    %79 = vmatpush.bf16.msra.mxu0 %v48
    %80 = vmatmul.bf16.gmra.mxu0 %v57
    %v81 = vpop.f32.mrf.mxu0
    %v82 = vadd.f32 0.0, %v81
    %v83 = vpop.f32.mrf.mxu0
    %84 = vdwg.mxu0
    %v93 = vunpack.c.l.b16 %v21
    %v94 = vunpack.c.h.b16 %v21
    %v95 = vunpack.c.l.b16 %v22
    %v96 = vunpack.c.h.b16 %v22
    %v97 = vunpack.c.l.b16 %v23
    %v98 = vunpack.c.h.b16 %v23
    %v99 = vunpack.c.l.b16 %v24
    %v100 = vunpack.c.h.b16 %v24
    %v101 = vunpack.c.l.b16 %v25
    %v102 = vunpack.c.h.b16 %v25
    %v103 = vunpack.c.l.b16 %v26
    %v104 = vunpack.c.h.b16 %v26
    %v105 = vunpack.c.l.b16 %v27
    %v106 = vunpack.c.h.b16 %v27
    %v107 = vunpack.c.l.b16 %v28
    %v108 = vunpack.c.h.b16 %v28
    %v109 = vpack.c.b16 %v95, %v93
    %v110 = vpack.c.b16 %v96, %v94
    %v111 = vpack.c.b16 %v99, %v97
    %v112 = vpack.c.b16 %v100, %v98
    %v113 = vpack.c.b16 %v103, %v101
    %v114 = vpack.c.b16 %v104, %v102
    %v115 = vpack.c.b16 %v107, %v105
    %v116 = vpack.c.b16 %v108, %v106
    %vm125 = vcmask 523264
    %v127 = vsel %vm125, %v29, 0
    %129 = vmatpush.bf16.msra.mxu0 0
    %130 = vmatpush.bf16.msra.mxu0 0
    %131 = vmatpush.bf16.msra.mxu0 0
    %132 = vmatpush.bf16.msra.mxu0 0
    %133 = vmatpush.bf16.msra.mxu0 %v115
    %134 = vmatpush.bf16.msra.mxu0 %v113
    %135 = vmatpush.bf16.msra.mxu0 %v111
    %136 = vmatpush.bf16.msra.mxu0 %v109
    %137 = vmatmul.bf16.gmra.mxu0 %v127
    %v138 = vpop.f32.mrf.mxu0
    %v139 = vadd.f32 %v69, %v138
    %v140 = vpop.f32.mrf.mxu0
    %141 = vdwg.mxu0
    %142 = vmatpush.bf16.msra.mxu0 0
    %143 = vmatpush.bf16.msra.mxu0 0
    %144 = vmatpush.bf16.msra.mxu0 0
    %145 = vmatpush.bf16.msra.mxu0 0
    %146 = vmatpush.bf16.msra.mxu0 %v116
    %147 = vmatpush.bf16.msra.mxu0 %v114
    %148 = vmatpush.bf16.msra.mxu0 %v112
    %149 = vmatpush.bf16.msra.mxu0 %v110
    %150 = vmatmul.bf16.gmra.mxu0 %v127
    %v151 = vpop.f32.mrf.mxu0
    %v152 = vadd.f32 %v82, %v151
    %v153 = vpop.f32.mrf.mxu0
    %154 = vdwg.mxu0
    %v155 = vld [vmem:[%s3 + $0x2f0] sm:$0xff]
    %v156 = vunpack.c.l.bf16 %v155
    %v157 = vunpack.c.h.bf16 %v155
    %v158 = vadd.f32 %v139, %v156
    %v159 = vadd.f32 %v152, %v157
    %v160 = vmax.f32 %v158, 0.0
    %v161 = vmax.f32 %v159, 0.0
    %v162 = vld [vmem:[%s3 + $0x60] sm:$0xff]
    %v163 = vld [vmem:[%s3 + $0x68] sm:$0xff]
    %v164 = vld [vmem:[%s3 + $0x70] sm:$0xff]
    %v165 = vld [vmem:[%s3 + $0x78] sm:$0xff]
    %v166 = vld [vmem:[%s3 + $0x80] sm:$0xff]
    %v167 = vld [vmem:[%s3 + $0x88] sm:$0xff]
    %v168 = vld [vmem:[%s3 + $0x90] sm:$0xff]
    %v169 = vld [vmem:[%s3 + $0x98] sm:$0xff]
    %v170 = vld [vmem:[%s3 + $0xa0] sm:$0xff]
    %v171 = vld [vmem:[%s3 + $0xa8] sm:$0xff]
    %v172 = vld [vmem:[%s3 + $0xb0] sm:$0xff]
    %v173 = vld [vmem:[%s3 + $0xb8] sm:$0xff]
    %v174 = vld [vmem:[%s3 + $0xc0] sm:$0xff]
    %v175 = vld [vmem:[%s3 + $0xc8] sm:$0xff]
    %v176 = vld [vmem:[%s3 + $0xd0] sm:$0xff]
    %v177 = vld [vmem:[%s3 + $0xd8] sm:$0xff]
    %v178 = vld [vmem:[%s3 + $0xe0] sm:$0xff]
    %v179 = vld [vmem:[%s3 + $0xe8] sm:$0xff]
    %v180 = vld [vmem:[%s3 + $0xf0] sm:$0xff]
    %v181 = vld [vmem:[%s3 + $0xf8] sm:$0xff]
    %v182 = vld [vmem:[%s3 + $0x100] sm:$0xff]
    %v183 = vld [vmem:[%s3 + $0x108] sm:$0xff]
    %v184 = vld [vmem:[%s3 + $0x110] sm:$0xff]
    %v185 = vld [vmem:[%s3 + $0x118] sm:$0xff]
    %v186 = vpack.c.bf16 %v160, %v160
    %v187 = vpack.c.bf16 %v161, %v161
    %v188 = vld [vmem:[%s3 + $0x2f8] sm:$0xff]
    %v189 = vunpack.c.l.bf16 %v188
    %v190 = vunpack.c.h.bf16 %v188
    %v215 = vunpack.c.l.b16 %v162
    %v216 = vunpack.c.h.b16 %v162
    %v217 = vunpack.c.l.b16 %v163
    %v218 = vunpack.c.h.b16 %v163
    %v219 = vunpack.c.l.b16 %v164
    %v220 = vunpack.c.h.b16 %v164
    %v221 = vunpack.c.l.b16 %v165
    %v222 = vunpack.c.h.b16 %v165
    %v223 = vunpack.c.l.b16 %v166
    %v224 = vunpack.c.h.b16 %v166
    %v225 = vunpack.c.l.b16 %v167
    %v226 = vunpack.c.h.b16 %v167
    %v227 = vunpack.c.l.b16 %v168
    %v228 = vunpack.c.h.b16 %v168
    %v229 = vunpack.c.l.b16 %v169
    %v230 = vunpack.c.h.b16 %v169
    %v231 = vunpack.c.l.b16 %v170
    %v232 = vunpack.c.h.b16 %v170
    %v233 = vunpack.c.l.b16 %v171
    %v234 = vunpack.c.h.b16 %v171
    %v235 = vunpack.c.l.b16 %v172
    %v236 = vunpack.c.h.b16 %v172
    %v237 = vunpack.c.l.b16 %v173
    %v238 = vunpack.c.h.b16 %v173
    %v239 = vunpack.c.l.b16 %v174
    %v240 = vunpack.c.h.b16 %v174
    %v241 = vunpack.c.l.b16 %v175
    %v242 = vunpack.c.h.b16 %v175
    %v243 = vunpack.c.l.b16 %v176
    %v244 = vunpack.c.h.b16 %v176
    %v245 = vunpack.c.l.b16 %v177
    %v246 = vunpack.c.h.b16 %v177
    %v247 = vunpack.c.l.b16 %v178
    %v248 = vunpack.c.h.b16 %v178
    %v249 = vunpack.c.l.b16 %v179
    %v250 = vunpack.c.h.b16 %v179
    %v251 = vunpack.c.l.b16 %v180
    %v252 = vunpack.c.h.b16 %v180
    %v253 = vunpack.c.l.b16 %v181
    %v254 = vunpack.c.h.b16 %v181
    %v255 = vunpack.c.l.b16 %v182
    %v256 = vunpack.c.h.b16 %v182
    %v257 = vunpack.c.l.b16 %v183
    %v258 = vunpack.c.h.b16 %v183
    %v259 = vunpack.c.l.b16 %v184
    %v260 = vunpack.c.h.b16 %v184
    %v261 = vunpack.c.l.b16 %v185
    %v262 = vunpack.c.h.b16 %v185
    %v263 = vpack.c.b16 %v217, %v215
    %v264 = vpack.c.b16 %v218, %v216
    %v265 = vpack.c.b16 %v221, %v219
    %v266 = vpack.c.b16 %v222, %v220
    %v267 = vpack.c.b16 %v225, %v223
    %v268 = vpack.c.b16 %v226, %v224
    %v269 = vpack.c.b16 %v229, %v227
    %v270 = vpack.c.b16 %v230, %v228
    %v271 = vpack.c.b16 %v233, %v231
    %v272 = vpack.c.b16 %v234, %v232
    %v273 = vpack.c.b16 %v237, %v235
    %v274 = vpack.c.b16 %v238, %v236
    %v275 = vpack.c.b16 %v241, %v239
    %v276 = vpack.c.b16 %v242, %v240
    %v277 = vpack.c.b16 %v245, %v243
    %v278 = vpack.c.b16 %v246, %v244
    %v279 = vpack.c.b16 %v249, %v247
    %v280 = vpack.c.b16 %v250, %v248
    %v281 = vpack.c.b16 %v253, %v251
    %v282 = vpack.c.b16 %v254, %v252
    %v283 = vpack.c.b16 %v257, %v255
    %v284 = vpack.c.b16 %v258, %v256
    %v285 = vpack.c.b16 %v261, %v259
    %v286 = vpack.c.b16 %v262, %v260
    %v312 = vsel %vm125, %v187, 0
    %314 = vmatpush.bf16.msra.mxu0 %v277
    %315 = vmatpush.bf16.msra.mxu0 %v275
    %316 = vmatpush.bf16.msra.mxu0 %v273
    %317 = vmatpush.bf16.msra.mxu0 %v271
    %318 = vmatpush.bf16.msra.mxu0 %v269
    %319 = vmatpush.bf16.msra.mxu0 %v267
    %320 = vmatpush.bf16.msra.mxu0 %v265
    %321 = vmatpush.bf16.msra.mxu0 %v263
    %322 = vmatmul.bf16.gmra.mxu0 %v186
    %v323 = vpop.f32.mrf.mxu0
    %v324 = vadd.f32 %v189, %v323
    %v325 = vpop.f32.mrf.mxu0
    %326 = vdwg.mxu0
    %327 = vmatpush.bf16.msra.mxu0 0
    %328 = vmatpush.bf16.msra.mxu0 0
    %329 = vmatpush.bf16.msra.mxu0 0
    %330 = vmatpush.bf16.msra.mxu0 0
    %331 = vmatpush.bf16.msra.mxu0 %v285
    %332 = vmatpush.bf16.msra.mxu0 %v283
    %333 = vmatpush.bf16.msra.mxu0 %v281
    %334 = vmatpush.bf16.msra.mxu0 %v279
    %335 = vmatmul.bf16.gmra.mxu0 %v312
    %v336 = vpop.f32.mrf.mxu0
    %v337 = vadd.f32 %v324, %v336
    %v338 = vpop.f32.mrf.mxu0
    %339 = vdwg.mxu0
    %340 = vmatpush.bf16.msra.mxu0 %v278
    %341 = vmatpush.bf16.msra.mxu0 %v276
    %342 = vmatpush.bf16.msra.mxu0 %v274
    %343 = vmatpush.bf16.msra.mxu0 %v272
    %344 = vmatpush.bf16.msra.mxu0 %v270
    %345 = vmatpush.bf16.msra.mxu0 %v268
    %346 = vmatpush.bf16.msra.mxu0 %v266
    %347 = vmatpush.bf16.msra.mxu0 %v264
    %348 = vmatmul.bf16.gmra.mxu0 %v186
    %v349 = vpop.f32.mrf.mxu0
    %v350 = vadd.f32 %v190, %v349
    %v351 = vpop.f32.mrf.mxu0
    %352 = vdwg.mxu0
    %353 = vmatpush.bf16.msra.mxu0 0
    %354 = vmatpush.bf16.msra.mxu0 0
    %355 = vmatpush.bf16.msra.mxu0 0
    %356 = vmatpush.bf16.msra.mxu0 0
    %357 = vmatpush.bf16.msra.mxu0 %v286
    %358 = vmatpush.bf16.msra.mxu0 %v284
    %359 = vmatpush.bf16.msra.mxu0 %v282
    %360 = vmatpush.bf16.msra.mxu0 %v280
    %361 = vmatmul.bf16.gmra.mxu0 %v312
    %v362 = vpop.f32.mrf.mxu0
    %v363 = vadd.f32 %v350, %v362
    %v364 = vpop.f32.mrf.mxu0
    %365 = vdwg.mxu0
    %v366 = vmax.f32 %v337, 0.0
    %v367 = vmax.f32 %v363, 0.0
    %v368 = vld [vmem:[%s3 + $0x120] sm:$0xf]
    %v369 = vld [vmem:[%s3 + $0x128] sm:$0xf]
    %v370 = vld [vmem:[%s3 + $0x130] sm:$0xf]
    %v371 = vld [vmem:[%s3 + $0x138] sm:$0xf]
    %v372 = vld [vmem:[%s3 + $0x140] sm:$0xf]
    %v373 = vld [vmem:[%s3 + $0x148] sm:$0xf]
    %v374 = vld [vmem:[%s3 + $0x150] sm:$0xf]
    %v375 = vld [vmem:[%s3 + $0x158] sm:$0xf]
    %v376 = vld [vmem:[%s3 + $0x160] sm:$0xf]
    %v377 = vld [vmem:[%s3 + $0x168] sm:$0xf]
    %v378 = vld [vmem:[%s3 + $0x170] sm:$0xf]
    %v379 = vld [vmem:[%s3 + $0x178] sm:$0xf]
    %v380 = vld [vmem:[%s3 + $0x180] sm:$0xf]
    %v381 = vld [vmem:[%s3 + $0x188] sm:$0xf]
    %v382 = vld [vmem:[%s3 + $0x190] sm:$0xf]
    %v383 = vld [vmem:[%s3 + $0x198] sm:$0xf]
    %v384 = vld [vmem:[%s3 + $0x1a0] sm:$0xf]
    %v385 = vld [vmem:[%s3 + $0x1a8] sm:$0xf]
    %v386 = vld [vmem:[%s3 + $0x1b0] sm:$0xf]
    %v387 = vld [vmem:[%s3 + $0x1b8] sm:$0xf]
    %v388 = vld [vmem:[%s3 + $0x1c0] sm:$0xf]
    %v389 = vld [vmem:[%s3 + $0x1c8] sm:$0xf]
    %v390 = vld [vmem:[%s3 + $0x1d0] sm:$0xf]
    %v391 = vld [vmem:[%s3 + $0x1d8] sm:$0xf]
    %v392 = vpack.c.bf16 %v366, %v366
    %v393 = vpack.c.bf16 %v367, %v367
    %v394 = vld [vmem:[%s3 + $0x300] sm:$0xf]
    %v395 = vunpack.c.l.bf16 %v394
    %v420 = vunpack.c.l.b16 %v368
    %v421 = vunpack.c.l.b16 %v369
    %v422 = vunpack.c.l.b16 %v370
    %v423 = vunpack.c.l.b16 %v371
    %v424 = vunpack.c.l.b16 %v372
    %v425 = vunpack.c.l.b16 %v373
    %v426 = vunpack.c.l.b16 %v374
    %v427 = vunpack.c.l.b16 %v375
    %v428 = vunpack.c.l.b16 %v376
    %v429 = vunpack.c.l.b16 %v377
    %v430 = vunpack.c.l.b16 %v378
    %v431 = vunpack.c.l.b16 %v379
    %v432 = vunpack.c.l.b16 %v380
    %v433 = vunpack.c.l.b16 %v381
    %v434 = vunpack.c.l.b16 %v382
    %v435 = vunpack.c.l.b16 %v383
    %v436 = vunpack.c.l.b16 %v384
    %v437 = vunpack.c.l.b16 %v385
    %v438 = vunpack.c.l.b16 %v386
    %v439 = vunpack.c.l.b16 %v387
    %v440 = vunpack.c.l.b16 %v388
    %v441 = vunpack.c.l.b16 %v389
    %v442 = vunpack.c.l.b16 %v390
    %v443 = vunpack.c.l.b16 %v391
    %v444 = vpack.c.b16 %v421, %v420
    %v445 = vpack.c.b16 %v423, %v422
    %v446 = vpack.c.b16 %v425, %v424
    %v447 = vpack.c.b16 %v427, %v426
    %v448 = vpack.c.b16 %v429, %v428
    %v449 = vpack.c.b16 %v431, %v430
    %v450 = vpack.c.b16 %v433, %v432
    %v451 = vpack.c.b16 %v435, %v434
    %v452 = vpack.c.b16 %v437, %v436
    %v453 = vpack.c.b16 %v439, %v438
    %v454 = vpack.c.b16 %v441, %v440
    %v455 = vpack.c.b16 %v443, %v442
    %v469 = vsel %vm125, %v393, 0
    %471 = vmatpush.bf16.msra.mxu0 %v451
    %472 = vmatpush.bf16.msra.mxu0 %v450
    %473 = vmatpush.bf16.msra.mxu0 %v449
    %474 = vmatpush.bf16.msra.mxu0 %v448
    %475 = vmatpush.bf16.msra.mxu0 %v447
    %476 = vmatpush.bf16.msra.mxu0 %v446
    %477 = vmatpush.bf16.msra.mxu0 %v445
    %478 = vmatpush.bf16.msra.mxu0 %v444
    %479 = vmatmul.bf16.gmra.mxu0 %v392
    %v480 = vpop.f32.mrf.mxu0
    %v481 = vadd.f32 %v395, %v480
    %v482 = vpop.f32.mrf.mxu0
    %483 = vdwg.mxu0
    %484 = vmatpush.bf16.msra.mxu0 0
    %485 = vmatpush.bf16.msra.mxu0 0
    %486 = vmatpush.bf16.msra.mxu0 0
    %487 = vmatpush.bf16.msra.mxu0 0
    %488 = vmatpush.bf16.msra.mxu0 %v455
    %489 = vmatpush.bf16.msra.mxu0 %v454
    %490 = vmatpush.bf16.msra.mxu0 %v453
    %491 = vmatpush.bf16.msra.mxu0 %v452
    %492 = vmatmul.bf16.gmra.mxu0 %v469
    %v493 = vpop.f32.mrf.mxu0
    %v494 = vadd.f32 %v481, %v493
    %v495 = vpop.f32.mrf.mxu0
    %496 = vdwg.mxu0
    %v497 = vld [vmem:[%s2] sm:$0xff]
    %v498 = vmul.f32 %v494, 0.5
    %v499 = vmul.f32 %v498, 1.442695
    %v500 = vpow.pop %v499
    %502 = vrot.lane.b32.xlu0 %v500, 112
    %v503 = vpop.permute.xlu0 %502
    %v505 = vmul.f32 %v497, %v503
    %v506 = vadd.f32 %v505, %v494
    %v507 = vld [vmem:[%s3 + $0x1e0] sm:$0xf]
    %v508 = vld [vmem:[%s3 + $0x1e8] sm:$0xf]
    %v509 = vpack.c.bf16 %v506, %v506
    %v510 = vld [vmem:[%s3 + $0x308] sm:$0xf]
    %v511 = vunpack.c.l.bf16 %v510
    %v514 = vunpack.c.l.b16 %v507
    %v515 = vunpack.c.l.b16 %v508
    %v516 = vpack.c.b16 %v515, %v514
    %vm518 = vcmask 130048
    %v520 = vsel %vm518, %v509, 0
    %522 = vmatpush.bf16.msra.mxu0 0
    %523 = vmatpush.bf16.msra.mxu0 0
    %524 = vmatpush.bf16.msra.mxu0 0
    %525 = vmatpush.bf16.msra.mxu0 0
    %526 = vmatpush.bf16.msra.mxu0 0
    %527 = vmatpush.bf16.msra.mxu0 0
    %528 = vmatpush.bf16.msra.mxu0 0
    %529 = vmatpush.bf16.msra.mxu0 %v516
    %530 = vmatmul.bf16.gmra.mxu0 %v520
    %v531 = vpop.f32.mrf.mxu0
    %v532 = vadd.f32 %v511, %v531
    %v533 = vpop.f32.mrf.mxu0
    %534 = vdwg.mxu0
    %v535 = vmax.f32 %v532, 0.0
    %v536 = vld [vmem:[%s3 + $0x1f0] sm:$0xf]
    %v537 = vld [vmem:[%s3 + $0x1f8] sm:$0xf]
    %v538 = vld [vmem:[%s3 + $0x200] sm:$0xf]
    %v539 = vld [vmem:[%s3 + $0x208] sm:$0xf]
    %v540 = vld [vmem:[%s3 + $0x210] sm:$0xf]
    %v541 = vld [vmem:[%s3 + $0x218] sm:$0xf]
    %v542 = vld [vmem:[%s3 + $0x220] sm:$0xf]
    %v543 = vld [vmem:[%s3 + $0x228] sm:$0xf]
    %v544 = vld [vmem:[%s3 + $0x230] sm:$0xf]
    %v545 = vld [vmem:[%s3 + $0x238] sm:$0xf]
    %v546 = vld [vmem:[%s3 + $0x240] sm:$0xf]
    %v547 = vld [vmem:[%s3 + $0x248] sm:$0xf]
    %v548 = vld [vmem:[%s3 + $0x250] sm:$0xf]
    %v549 = vld [vmem:[%s3 + $0x258] sm:$0xf]
    %v550 = vld [vmem:[%s3 + $0x260] sm:$0xf]
    %v551 = vld [vmem:[%s3 + $0x268] sm:$0xf]
    %v552 = vpack.c.bf16 %v535, %v535
    %v553 = vld [vmem:[%s3 + $0x310] sm:$0xf]
    %v554 = vunpack.c.l.bf16 %v553
    %v571 = vunpack.c.l.b16 %v536
    %v572 = vunpack.c.l.b16 %v537
    %v573 = vunpack.c.l.b16 %v538
    %v574 = vunpack.c.l.b16 %v539
    %v575 = vunpack.c.l.b16 %v540
    %v576 = vunpack.c.l.b16 %v541
    %v577 = vunpack.c.l.b16 %v542
    %v578 = vunpack.c.l.b16 %v543
    %v579 = vunpack.c.l.b16 %v544
    %v580 = vunpack.c.l.b16 %v545
    %v581 = vunpack.c.l.b16 %v546
    %v582 = vunpack.c.l.b16 %v547
    %v583 = vunpack.c.l.b16 %v548
    %v584 = vunpack.c.l.b16 %v549
    %v585 = vunpack.c.l.b16 %v550
    %v586 = vunpack.c.l.b16 %v551
    %v587 = vpack.c.b16 %v572, %v571
    %v588 = vpack.c.b16 %v574, %v573
    %v589 = vpack.c.b16 %v576, %v575
    %v590 = vpack.c.b16 %v578, %v577
    %v591 = vpack.c.b16 %v580, %v579
    %v592 = vpack.c.b16 %v582, %v581
    %v593 = vpack.c.b16 %v584, %v583
    %v594 = vpack.c.b16 %v586, %v585
    %603 = vmatpush.bf16.msra.mxu0 %v594
    %604 = vmatpush.bf16.msra.mxu0 %v593
    %605 = vmatpush.bf16.msra.mxu0 %v592
    %606 = vmatpush.bf16.msra.mxu0 %v591
    %607 = vmatpush.bf16.msra.mxu0 %v590
    %608 = vmatpush.bf16.msra.mxu0 %v589
    %609 = vmatpush.bf16.msra.mxu0 %v588
    %610 = vmatpush.bf16.msra.mxu0 %v587
    %611 = vmatmul.bf16.gmra.mxu0 %v552
    %v612 = vpop.f32.mrf.mxu0
    %v613 = vadd.f32 %v554, %v612
    %v614 = vpop.f32.mrf.mxu0
    %615 = vdwg.mxu0
    %v616 = vmax.f32 %v613, 0.0
    %v617 = vld [vmem:[%s3 + $0x270] sm:$0xf]
    %v618 = vld [vmem:[%s3 + $0x278] sm:$0xf]
    %v619 = vld [vmem:[%s3 + $0x280] sm:$0xf]
    %v620 = vld [vmem:[%s3 + $0x288] sm:$0xf]
    %v621 = vld [vmem:[%s3 + $0x290] sm:$0xf]
    %v622 = vld [vmem:[%s3 + $0x298] sm:$0xf]
    %v623 = vld [vmem:[%s3 + $0x2a0] sm:$0xf]
    %v624 = vld [vmem:[%s3 + $0x2a8] sm:$0xf]
    %v625 = vld [vmem:[%s3 + $0x2b0] sm:$0xf]
    %v626 = vld [vmem:[%s3 + $0x2b8] sm:$0xf]
    %v627 = vld [vmem:[%s3 + $0x2c0] sm:$0xf]
    %v628 = vld [vmem:[%s3 + $0x2c8] sm:$0xf]
    %v629 = vld [vmem:[%s3 + $0x2d0] sm:$0xf]
    %v630 = vld [vmem:[%s3 + $0x2d8] sm:$0xf]
    %v631 = vld [vmem:[%s3 + $0x2e0] sm:$0xf]
    %v632 = vld [vmem:[%s3 + $0x2e8] sm:$0xf]
    %v633 = vpack.c.bf16 %v616, %v616
    %v634 = vld [vmem:[%s3 + $0x318] sm:$0xf]
    %v635 = vunpack.c.l.bf16 %v634
    %v652 = vunpack.c.l.b16 %v617
    %v653 = vunpack.c.l.b16 %v618
    %v654 = vunpack.c.l.b16 %v619
    %v655 = vunpack.c.l.b16 %v620
    %v656 = vunpack.c.l.b16 %v621
    %v657 = vunpack.c.l.b16 %v622
    %v658 = vunpack.c.l.b16 %v623
    %v659 = vunpack.c.l.b16 %v624
    %v660 = vunpack.c.l.b16 %v625
    %v661 = vunpack.c.l.b16 %v626
    %v662 = vunpack.c.l.b16 %v627
    %v663 = vunpack.c.l.b16 %v628
    %v664 = vunpack.c.l.b16 %v629
    %v665 = vunpack.c.l.b16 %v630
    %v666 = vunpack.c.l.b16 %v631
    %v667 = vunpack.c.l.b16 %v632
    %v668 = vpack.c.b16 %v653, %v652
    %v669 = vpack.c.b16 %v655, %v654
    %v670 = vpack.c.b16 %v657, %v656
    %v671 = vpack.c.b16 %v659, %v658
    %v672 = vpack.c.b16 %v661, %v660
    %v673 = vpack.c.b16 %v663, %v662
    %v674 = vpack.c.b16 %v665, %v664
    %v675 = vpack.c.b16 %v667, %v666
    %684 = vmatpush.bf16.msra.mxu0 %v675
    %685 = vmatpush.bf16.msra.mxu0 %v674
    %686 = vmatpush.bf16.msra.mxu0 %v673
    %687 = vmatpush.bf16.msra.mxu0 %v672
    %688 = vmatpush.bf16.msra.mxu0 %v671
    %689 = vmatpush.bf16.msra.mxu0 %v670
    %690 = vmatpush.bf16.msra.mxu0 %v669
    %691 = vmatpush.bf16.msra.mxu0 %v668
    %692 = vmatmul.bf16.gmra.mxu0 %v633
    %v693 = vpop.f32.mrf.mxu0
    %v694 = vadd.f32 %v635, %v693
    %v695 = vpop.f32.mrf.mxu0
    %696 = vdwg.mxu0
    %v697 = vsub.f32 0.0, %v694
    %v698 = vmul.f32 %v697, 1.442695
    %v699 = vpow.pop %v698
    %v700 = vadd.f32 %v699, 1.0
    %v701 = vrcp.pop %v700
    %vm702 = vcmask 785920
    %v703 = vsel %vm702, %v694, -inf
    %704 = vmax.xlane.f32.xlu0 %v703
    %v705 = vpop.xlane.xlu0 %704
    %v706 = vsub.f32 %v694, %v705
    %v707 = vmul.f32 %v706, 1.442695
    %v708 = vpow.pop %v707
    %710 = vrot.lane.b32.xlu0 %v708, 64
    %v711 = vpop.permute.xlu0 %710
    %v713 = vsel %vm55, %v711, 0.0
    %714 = vadd.xlane.f32.xlu0 %v713
    %v715 = vpop.xlane.xlu0 %714
    %v716 = vlog2.pop %v715
    %v717 = vmul.f32 %v716, 0.6931472
    %v718 = vsub.f32 %v706, %v717
    %vm719 = vcmask 785408
    %720 = vst.msk [vmem:[#allocation2] sm:$0xff] %vm719, %v494
    %722 = vrot.lane.b32.xlu0 %v506, 96
    %v723 = vpop.permute.xlu0 %722
    %vm725 = vcmask 917248
    %726 = vst.msk [vmem:[#allocation2] sm:$0xff] %vm725, %v723
    %728 = vrot.lane.b32.xlu0 %v701, 112
    %v729 = vpop.permute.xlu0 %728
    %vm731 = vcmask 1048448
    %732 = vst.msk [vmem:[#allocation2] sm:$0xff] %vm731, %v729
    %vm733 = vcmask 392192
    %734 = vst.msk [vmem:[#allocation2 + $0x8] sm:$0xff] %vm733, %v729
    %736 = vrot.lane.b32.xlu0 %v718, 112
    %v737 = vpop.permute.xlu0 %736
    %vm739 = vcmask 654720
    %740 = vst.msk [vmem:[#allocation2 + $0x8] sm:$0xff] %vm739, %v737
    // Predicated region
    $region18: #{jmvae_forward.1} parent=1 // pred_check
      _
    $region19: #{jmvae_forward.1} parent=1 // pred_check_branch
      %742 = sbr.rel (0) target = $region21
    $region20: #{jmvae_forward.1} parent=1 // pred_region
      %744 = vsyncadd [#allocation3], 0
      %s746 = sshll.u32 [#allocation2], 4
      %s747 = int_to_ptr.vmem [resolvable:$true] %s746
      %s748 = sshll.u32 %s4, 4
      %s749 = int_to_ptr.hbm [resolvable:$true] %s748
      %751 = dma.vmem_to_hbm [thread:$0]  %s747, 256, %s749, [#allocation3]
    $region21: #{jmvae_forward.1} parent=1 // pred_fallthru
      _
    // Predicated region
    $region22: #{jmvae_forward.1} parent=1 // pred_check
      _
    $region23: #{jmvae_forward.1} parent=1 // pred_check_branch
      %753 = sbr.rel (0) target = $region25
    $region24: #{jmvae_forward.1} parent=1 // pred_region
      %755 = dma.done [#allocation3], 256
    $region25: #{jmvae_forward.1} parent=1 // pred_fallthru
      _
    %756 = vsyncpa [#allocation3], 1

</llo_original>
